<compile_context>
chip_gen: v7x
topology: tpu7x:2x2x1
jax: 0.10.0
libtpu: 0.0.40
codegen_flags: <defaults>
</compile_context>

<pallas_src>
import jax
import jax.numpy as jnp
from jax.experimental import pallas as pl
from jax.experimental.pallas import tpu as pltpu


def join_two_linear_kernel(x1_ref, x2_ref, w1_ref, b1_ref, w2_ref, b2_ref, out_ref):
    """Two MXU dots; f32 accumulation + f32 bias add; lane-aligned half stores."""
    h1 = w1_ref.shape[1]
    acc1 = jnp.dot(x1_ref[...], w1_ref[...], preferred_element_type=jnp.float32)
    acc2 = jnp.dot(x2_ref[...], w2_ref[...], preferred_element_type=jnp.float32)
    # H1 is a multiple of 128 in the intended configs, so both stores are
    # unmasked lane-dense vst; if not, they degrade gracefully to masked stores.
    out_ref[:, :h1] = (acc1 + b1_ref[...]).astype(out_ref.dtype)
    out_ref[:, h1:] = (acc2 + b2_ref[...]).astype(out_ref.dtype)


def _round_up(x, m):
    return (x + m - 1) // m * m


def join_forward(x1, w1, b1, x2, w2, b2, *, block_b=1024, stream_dtype=None):
    """Fused Join(Linear, Linear): cat([x1@w1+b1, x2@w2+b2], dim=1).

    Biases may be 1-D (PyTorch style) or (1, H); accumulation is always f32.
    If `stream_dtype` (e.g. jnp.bfloat16) is given, x/w/out are streamed in
    that dtype while the epilogue math stays in f32.
    """
    B = x1.shape[0]
    D1, H1 = w1.shape
    D2, H2 = w2.shape
    H = H1 + H2

    # Normalize bias layout; keep biases in f32 for the epilogue add.
    b1 = jnp.asarray(b1, jnp.float32).reshape(1, H1)
    b2 = jnp.asarray(b2, jnp.float32).reshape(1, H2)

    if stream_dtype is not None:
        x1c, x2c = x1.astype(stream_dtype), x2.astype(stream_dtype)
        w1c, w2c = w1.astype(stream_dtype), w2.astype(stream_dtype)
        out_dtype = jnp.dtype(stream_dtype)
    else:
        x1c, x2c, w1c, w2c = x1, x2, w1, w2
        out_dtype = jnp.dtype(x1.dtype)

    # --- batch tiling --------------------------------------------------------
    # >= 2 grid steps whenever B allows it (so v7x's second TC gets work);
    # partial last blocks are clipped by Pallas, so no pad / slice needed.
    if B >= 16:
        tm = min(block_b, _round_up(pl.cdiv(B, 2), 8))
    else:
        tm = B  # full-array dim => always a legal block shape
    grid = (pl.cdiv(B, tm),)

    # --- cost estimate (matches what the kernel actually executes) -----------
    s_bytes = jnp.dtype(x1c.dtype).itemsize
    w_bytes = jnp.dtype(w1c.dtype).itemsize
    cost = pl.CostEstimate(
        flops=2 * B * (D1 * H1 + D2 * H2),
        transcendentals=0,
        bytes_accessed=(
            (x1c.size + x2c.size) * s_bytes
            + (w1c.size + w2c.size) * w_bytes
            + (b1.size + b2.size) * 4
            + B * H * s_bytes
        ),
    )

    # --- VMEM budget (only raise the scoped limit if we would exceed it) -----
    vmem_est = (
        2 * tm * (D1 + D2 + H) * s_bytes          # double-buffered x1, x2, out tiles
        + 2 * (D1 * H1 + D2 * H2) * w_bytes       # weights (resident, 2-buffered alloc)
        + 2 * (H1 + H2) * 4                       # biases
    )
    vmem_limit = int(vmem_est * 1.25) if vmem_est > (24 << 20) else None

    out = pl.pallas_call(
        join_two_linear_kernel,
        out_shape=jax.ShapeDtypeStruct((B, H), out_dtype),
        grid_spec=pltpu.PrefetchScalarGridSpec(
            num_scalar_prefetch=0,
            grid=grid,
            in_specs=[
                pl.BlockSpec((tm, D1), lambda i: (i, 0)),   # x1 tile streams
                pl.BlockSpec((tm, D2), lambda i: (i, 0)),   # x2 tile streams
                pl.BlockSpec((D1, H1), lambda i: (0, 0)),   # w1 resident
                pl.BlockSpec((1, H1), lambda i: (0, 0)),    # b1 resident
                pl.BlockSpec((D2, H2), lambda i: (0, 0)),   # w2 resident
                pl.BlockSpec((1, H2), lambda i: (0, 0)),    # b2 resident
            ],
            out_specs=pl.BlockSpec((tm, H), lambda i: (i, 0)),
        ),
        compiler_params=pltpu.CompilerParams(
            dimension_semantics=("parallel",),
            vmem_limit_bytes=vmem_limit,
        ),
        cost_estimate=cost,
    )(x1c, x2c, w1c, b1, w2c, b2)

    return out


if __name__ == "__main__":
    # Small shapes: batch=8, two input feature dims, two output feature dims.
    B, D1, D2, H1, H2 = 8, 32, 64, 128, 128

    key = jax.random.PRNGKey(0)
    kx1, kx2, kw1, kb1, kw2, kb2 = jax.random.split(key, 6)

    x1 = jax.random.normal(kx1, (B, D1), dtype=jnp.float32)
    x2 = jax.random.normal(kx2, (B, D2), dtype=jnp.float32)

    # Deterministic synthetic parameters for the two Linear sub-modules.
    w1 = jax.random.normal(kw1, (D1, H1), dtype=jnp.float32) * 0.05
    b1 = jax.random.normal(kb1, (H1,), dtype=jnp.float32) * 0.05
    w2 = jax.random.normal(kw2, (D2, H2), dtype=jnp.float32) * 0.05
    b2 = jax.random.normal(kb2, (H2,), dtype=jnp.float32) * 0.05

    ref = jnp.concatenate([x1 @ w1 + b1, x2 @ w2 + b2], axis=1)

    # f32 path (default).
    out = jax.block_until_ready(join_forward(x1, w1, b1, x2, w2, b2))
    assert out.shape == (B, H1 + H2), out.shape
    assert jnp.allclose(out, ref, atol=1e-5, rtol=1e-5), "f32 mismatch vs reference"

    # bf16-streaming path (f32 accumulation) — loose tolerance vs f32 reference.
    out_bf16 = jax.block_until_ready(
        join_forward(x1, w1, b1, x2, w2, b2, stream_dtype=jnp.bfloat16)
    )
    assert out_bf16.dtype == jnp.bfloat16
    assert jnp.allclose(out_bf16.astype(jnp.float32), ref, atol=3e-2, rtol=3e-2), \
        "bf16 mismatch vs reference"

    # 2-step grid + partial last block (exercises v7x 2-TC sharding and
    # OOB-clipped stores without any wrapper pad/slice): B=40 -> tm=24, grid=(2,).
    B2 = 40
    xa = jax.random.normal(jax.random.PRNGKey(1), (B2, D1), dtype=jnp.float32)
    xb = jax.random.normal(jax.random.PRNGKey(2), (B2, D2), dtype=jnp.float32)
    out2 = jax.block_until_ready(join_forward(xa, w1, b1, xb, w2, b2))
    ref2 = jnp.concatenate([xa @ w1 + b1, xb @ w2 + b2], axis=1)
    assert out2.shape == (B2, H1 + H2), out2.shape
    assert jnp.allclose(out2, ref2, atol=1e-5, rtol=1e-5), "partial-block mismatch"

    print("KERNEL_OK")
</pallas_src>

<mosaic_0001>
module attributes {stable_mosaic.version = 11 : i64} {
  func.func @join_two_linear_kernel(%arg0: i32, %arg1: memref<8x32xf32, #tpu.memory_space<vmem>>, %arg2: memref<8x64xf32, #tpu.memory_space<vmem>>, %arg3: memref<32x128xf32, #tpu.memory_space<vmem>>, %arg4: memref<1x128xf32, #tpu.memory_space<vmem>>, %arg5: memref<64x128xf32, #tpu.memory_space<vmem>>, %arg6: memref<1x128xf32, #tpu.memory_space<vmem>>, %arg7: memref<8x256xf32, #tpu.memory_space<vmem>>) attributes {dimension_semantics = [#tpu.dimension_semantics<parallel>], iteration_bounds = array<i64: 1>, scalar_prefetch = 0 : i64, scratch_operands = 0 : i64, tpu.core_type = #tpu.core_type<tc>, window_params = [{transform_indices = @transform_0, window_bounds = array<i64: 8, 32>}, {transform_indices = @transform_1, window_bounds = array<i64: 8, 64>}, {pipeline_mode = #tpu.pipeline_mode<synchronous>, transform_indices = @transform_2, window_bounds = array<i64: 32, 128>}, {pipeline_mode = #tpu.pipeline_mode<synchronous>, transform_indices = @transform_3, window_bounds = array<i64: 1, 128>}, {pipeline_mode = #tpu.pipeline_mode<synchronous>, transform_indices = @transform_4, window_bounds = array<i64: 64, 128>}, {pipeline_mode = #tpu.pipeline_mode<synchronous>, transform_indices = @transform_5, window_bounds = array<i64: 1, 128>}, {transform_indices = @transform_6, window_bounds = array<i64: 8, 256>}]} {
    %c0 = arith.constant 0 : index
    %c0_0 = arith.constant 0 : index
    %0 = vector.load %arg1[%c0, %c0_0] : memref<8x32xf32, #tpu.memory_space<vmem>>, vector<8x32xf32>
    %c0_1 = arith.constant 0 : index
    %c0_2 = arith.constant 0 : index
    %1 = vector.load %arg3[%c0_1, %c0_2] : memref<32x128xf32, #tpu.memory_space<vmem>>, vector<32x128xf32>
    %cst = arith.constant dense<0.000000e+00> : vector<8x128xf32>
    %2 = tpu.matmul %0, %1, %cst {dimension_numbers = #tpu.dot_dimension_numbers<[1], [0], [0], [1], [0, 0, 1, 1], [], []>} : vector<8x32xf32>, vector<32x128xf32>, vector<8x128xf32> -> vector<8x128xf32>
    %c0_3 = arith.constant 0 : index
    %c0_4 = arith.constant 0 : index
    %3 = vector.load %arg2[%c0_3, %c0_4] : memref<8x64xf32, #tpu.memory_space<vmem>>, vector<8x64xf32>
    %c0_5 = arith.constant 0 : index
    %c0_6 = arith.constant 0 : index
    %4 = vector.load %arg5[%c0_5, %c0_6] : memref<64x128xf32, #tpu.memory_space<vmem>>, vector<64x128xf32>
    %cst_7 = arith.constant dense<0.000000e+00> : vector<8x128xf32>
    %5 = tpu.matmul %3, %4, %cst_7 {dimension_numbers = #tpu.dot_dimension_numbers<[1], [0], [0], [1], [0, 0, 1, 1], [], []>} : vector<8x64xf32>, vector<64x128xf32>, vector<8x128xf32> -> vector<8x128xf32>
    %c0_8 = arith.constant 0 : index
    %c0_9 = arith.constant 0 : index
    %6 = vector.load %arg4[%c0_8, %c0_9] : memref<1x128xf32, #tpu.memory_space<vmem>>, vector<1x128xf32>
    %7 = vector.broadcast %6 : vector<1x128xf32> to vector<8x128xf32>
    %8 = arith.addf %2, %7 : vector<8x128xf32>
    %c0_10 = arith.constant 0 : index
    %c0_11 = arith.constant 0 : index
    %9 = vector.load %arg7[%c0_10, %c0_11] : memref<8x256xf32, #tpu.memory_space<vmem>>, vector<8x128xf32>
    tpu.vector_store %arg7[%c0_10, %c0_11], %8 {strides = array<i32>} : memref<8x256xf32, #tpu.memory_space<vmem>>, vector<8x128xf32>,
    %c0_12 = arith.constant 0 : index
    %c0_13 = arith.constant 0 : index
    %10 = vector.load %arg6[%c0_12, %c0_13] : memref<1x128xf32, #tpu.memory_space<vmem>>, vector<1x128xf32>
    %11 = vector.broadcast %10 : vector<1x128xf32> to vector<8x128xf32>
    %12 = arith.addf %5, %11 : vector<8x128xf32>
    %c0_14 = arith.constant 0 : index
    %c128 = arith.constant 128 : index
    %13 = vector.load %arg7[%c0_14, %c128] : memref<8x256xf32, #tpu.memory_space<vmem>>, vector<8x128xf32>
    tpu.vector_store %arg7[%c0_14, %c128], %12 {strides = array<i32>} : memref<8x256xf32, #tpu.memory_space<vmem>>, vector<8x128xf32>,
    return
  }
  func.func @transform_0(%arg0: i32) -> (i32, i32) {
    %c0_i32 = arith.constant 0 : i32
    %c0_i32_0 = arith.constant 0 : i32
    return %arg0, %c0_i32 : i32, i32
  }
  func.func @transform_1(%arg0: i32) -> (i32, i32) {
    %c0_i32 = arith.constant 0 : i32
    %c0_i32_0 = arith.constant 0 : i32
    return %arg0, %c0_i32 : i32, i32
  }
  func.func @transform_2(%arg0: i32) -> (i32, i32) {
    %c0_i32 = arith.constant 0 : i32
    %c0_i32_0 = arith.constant 0 : i32
    %c0_i32_1 = arith.constant 0 : i32
    return %c0_i32, %c0_i32_0 : i32, i32
  }
  func.func @transform_3(%arg0: i32) -> (i32, i32) {
    %c0_i32 = arith.constant 0 : i32
    %c0_i32_0 = arith.constant 0 : i32
    %c0_i32_1 = arith.constant 0 : i32
    return %c0_i32, %c0_i32_0 : i32, i32
  }
  func.func @transform_4(%arg0: i32) -> (i32, i32) {
    %c0_i32 = arith.constant 0 : i32
    %c0_i32_0 = arith.constant 0 : i32
    %c0_i32_1 = arith.constant 0 : i32
    return %c0_i32, %c0_i32_0 : i32, i32
  }
  func.func @transform_5(%arg0: i32) -> (i32, i32) {
    %c0_i32 = arith.constant 0 : i32
    %c0_i32_0 = arith.constant 0 : i32
    %c0_i32_1 = arith.constant 0 : i32
    return %c0_i32, %c0_i32_0 : i32, i32
  }
  func.func @transform_6(%arg0: i32) -> (i32, i32) {
    %c0_i32 = arith.constant 0 : i32
    %c0_i32_0 = arith.constant 0 : i32
    return %arg0, %c0_i32 : i32, i32
  }
}

</mosaic_0001>

<llo_original>
// kernel: tpu_custom_call.1
$region0: #{tpu_custom_call.1}
  #allocation0 [shape = 'u32[]', space=smem, size = 0x4, offset = 0x4, fixed_abs, tag = 'smem constant byte address 0x4 - core index']
  #allocation1 [shape = 'u32[144,128]{1,0:T(1,128)}', space=vmem, size = 0x12000, scoped, tag = 'internal scratch']
  %s0 = inlined_call_operand.hbm [shape: f32[8,32], index: 0, kind: input, shape index: {}]
  %s1 = inlined_call_operand.hbm [shape: f32[8,64], index: 1, kind: input, shape index: {}]
  %s2 = inlined_call_operand.hbm [shape: f32[32,128], index: 2, kind: input, shape index: {}]
  %s3 = inlined_call_operand.vmem [shape: f32[1,128], index: 3, kind: input, shape index: {}]
  %s4 = inlined_call_operand.hbm [shape: f32[64,128], index: 4, kind: input, shape index: {}]
  %s5 = inlined_call_operand.vmem [shape: f32[1,128], index: 5, kind: input, shape index: {}]
  %s6 = inlined_call_operand.hbm [shape: f32[8,256], index: 6, kind: output, shape index: {}]
  %s7 = sld [smem:[#allocation0]]
  $region50: #{tpu_custom_call.1} parent=0
    _
  %s9 = ssub.s32 1, %s7
  %s10 = scalar_select 0, %s9, %s7
  $region1: #{tpu_custom_call.1} parent=0
    #allocation2 [shape = 'u8[4096]{0}', space=vmem, size = 0x1000, scoped, tag = 'input window, operand 0, single buffered']
    #allocation3 [shape = 's32[1]{0}', space=sflag, size = 0x4, scoped, tag = 'scoped memory for tpu_custom_call.1']
    #allocation4 [shape = 's32[1]{0}', space=sflag, size = 0x4, scoped, tag = 'scoped memory for tpu_custom_call.1']
    #allocation5 [shape = 'u8[4096]{0}', space=vmem, size = 0x1000, scoped, tag = 'input window, operand 1, single buffered']
    #allocation6 [shape = 's32[1]{0}', space=sflag, size = 0x4, scoped, tag = 'scoped memory for tpu_custom_call.1']
    #allocation7 [shape = 'u8[16384]{0}', space=vmem, size = 0x4000, scoped, tag = 'input window, operand 2, single buffered']
    #allocation8 [shape = 'u8[32768]{0}', space=vmem, size = 0x8000, scoped, tag = 'input window, operand 4, single buffered']
    #allocation9 [shape = 's32[1]{0}', space=sflag, size = 0x4, scoped, tag = 'scoped memory for tpu_custom_call.1']
    #allocation10 [shape = 'u8[8192]{0}', space=vmem, size = 0x2000, scoped, tag = 'output window, operand 0, single buffered']
    %11 = vsyncpa [#allocation3], 0
    %12 = vsyncpa [#allocation6], 0
    %13 = vsyncpa [#allocation9], 0
    %14 = vsyncpa [#allocation4], 0
    // Predicated region
    $region2: #{tpu_custom_call.1} parent=1 // pred_check
      _
    $region3: #{tpu_custom_call.1} parent=1 // pred_check_branch
      %16 = sbr.rel (0) target = $region5
    $region4: #{tpu_custom_call.1} parent=1 // pred_region
      %s18 = ssub.s32 128, 128
      %19 = vsyncadd [#allocation3], %s18
      %s21 = sshll.u32 [#allocation2], 4
      %s22 = int_to_ptr.vmem [resolvable:$true] %s21
      %24 = dma.hbm_to_vmem [thread:$0]  %s0, 128, %s22, [#allocation3]
    $region5: #{tpu_custom_call.1} parent=1 // pred_fallthru
      _
    // Predicated region
    $region6: #{tpu_custom_call.1} parent=1 // pred_check
      _
    $region7: #{tpu_custom_call.1} parent=1 // pred_check_branch
      %26 = sbr.rel (0) target = $region9
    $region8: #{tpu_custom_call.1} parent=1 // pred_region
      %s28 = ssub.s32 128, 128
      %29 = vsyncadd [#allocation6], %s28
      %s31 = sshll.u32 [#allocation5], 4
      %s32 = int_to_ptr.vmem [resolvable:$true] %s31
      %34 = dma.hbm_to_vmem [thread:$0]  %s1, 128, %s32, [#allocation6]
    $region9: #{tpu_custom_call.1} parent=1 // pred_fallthru
      _
    // Predicated region
    $region10: #{tpu_custom_call.1} parent=1 // pred_check
      _
    $region11: #{tpu_custom_call.1} parent=1 // pred_check_branch
      %36 = sbr.rel (0) target = $region13
    $region12: #{tpu_custom_call.1} parent=1 // pred_region
      %s38 = ssub.s32 512, 512
      %39 = vsyncadd [#allocation6], %s38
      %s40 = sshll.u32 [#allocation7], 4
      %s41 = int_to_ptr.vmem [resolvable:$true] %s40
      %46 = dma.hbm_to_vmem [thread:$0]  %s2, 512, %s41, [#allocation6], 128, 128, 8
    $region13: #{tpu_custom_call.1} parent=1 // pred_fallthru
      _
    // Predicated region
    $region14: #{tpu_custom_call.1} parent=1 // pred_check
      _
    $region15: #{tpu_custom_call.1} parent=1 // pred_check_branch
      %48 = sbr.rel (0) target = $region17
    $region16: #{tpu_custom_call.1} parent=1 // pred_region
      _
    $region17: #{tpu_custom_call.1} parent=1 // pred_fallthru
      _
    // Predicated region
    $region18: #{tpu_custom_call.1} parent=1 // pred_check
      _
    $region19: #{tpu_custom_call.1} parent=1 // pred_check_branch
      %50 = sbr.rel (0) target = $region21
    $region20: #{tpu_custom_call.1} parent=1 // pred_region
      %s52 = ssub.s32 1024, 1024
      %53 = vsyncadd [#allocation9], %s52
      %s54 = sshll.u32 [#allocation8], 4
      %s55 = int_to_ptr.vmem [resolvable:$true] %s54
      %60 = dma.hbm_to_vmem [thread:$0]  %s4, 1024, %s55, [#allocation9], 128, 128, 8
    $region21: #{tpu_custom_call.1} parent=1 // pred_fallthru
      _
    // Predicated region
    $region22: #{tpu_custom_call.1} parent=1 // pred_check
      _
    $region23: #{tpu_custom_call.1} parent=1 // pred_check_branch
      %62 = sbr.rel (0) target = $region25
    $region24: #{tpu_custom_call.1} parent=1 // pred_region
      _
    $region25: #{tpu_custom_call.1} parent=1 // pred_fallthru
      _
    // Predicated region
    $region26: #{tpu_custom_call.1} parent=1 // pred_check
      _
    $region27: #{tpu_custom_call.1} parent=1 // pred_check_branch
      %64 = sbr.rel (0) target = $region29
    $region28: #{tpu_custom_call.1} parent=1 // pred_region
      %65 = dma.done [#allocation3], 128
    $region29: #{tpu_custom_call.1} parent=1 // pred_fallthru
      _
    // Predicated region
    $region30: #{tpu_custom_call.1} parent=1 // pred_check
      _
    $region31: #{tpu_custom_call.1} parent=1 // pred_check_branch
      %67 = sbr.rel (0) target = $region33
    $region32: #{tpu_custom_call.1} parent=1 // pred_region
      %68 = dma.done [#allocation6], 128
    $region33: #{tpu_custom_call.1} parent=1 // pred_fallthru
      _
    // Predicated region
    $region34: #{tpu_custom_call.1} parent=1 // pred_check
      _
    $region35: #{tpu_custom_call.1} parent=1 // pred_check_branch
      %70 = sbr.rel (0) target = $region37
    $region36: #{tpu_custom_call.1} parent=1 // pred_region
      %71 = dma.done [#allocation6], 512
    $region37: #{tpu_custom_call.1} parent=1 // pred_fallthru
      _
    // Predicated region
    $region38: #{tpu_custom_call.1} parent=1 // pred_check
      _
    $region39: #{tpu_custom_call.1} parent=1 // pred_check_branch
      %73 = sbr.rel (0) target = $region41
    $region40: #{tpu_custom_call.1} parent=1 // pred_region
      %74 = dma.done [#allocation9], 1024
    $region41: #{tpu_custom_call.1} parent=1 // pred_fallthru
      _
    %v75 = vld [vmem:[#allocation2] sm:$0xff]
    %v76 = vld [vmem:[#allocation7] sm:$0xff]
    %v77 = vld [vmem:[#allocation7 + $0x8] sm:$0xff]
    %v78 = vld [vmem:[#allocation7 + $0x10] sm:$0xff]
    %v79 = vld [vmem:[#allocation7 + $0x18] sm:$0xff]
    %v80 = vld [vmem:[#allocation5] sm:$0xff]
    %v81 = vld [vmem:[#allocation8] sm:$0xff]
    %v82 = vld [vmem:[#allocation8 + $0x8] sm:$0xff]
    %v83 = vld [vmem:[#allocation8 + $0x10] sm:$0xff]
    %v84 = vld [vmem:[#allocation8 + $0x18] sm:$0xff]
    %v85 = vld [vmem:[#allocation8 + $0x20] sm:$0xff]
    %v86 = vld [vmem:[#allocation8 + $0x28] sm:$0xff]
    %v87 = vld [vmem:[#allocation8 + $0x30] sm:$0xff]
    %v88 = vld [vmem:[#allocation8 + $0x38] sm:$0xff]
    %v89 = vld [vmem:[%s3] sm:$0x1]
    %v91 = vlaneseq
    %v92 = vshrl.u32 %v91, 7
    %v93 = vsub.s32 0, %v92
    %v94 = vrot.slane %v89, %v93
    %vm96 = vcmask 261120
    %v98 = vsel %vm96, %v75, 0
    %100 = vmatprep.subr.mxu0 0.0
    %101 = vmatpush1.msra.mxu0 %v76
    %102 = vmatprep.subr.mxu0 0.0
    %103 = vmatpush1.msra.mxu0 %v77
    %104 = vmatprep.subr.mxu0 0.0
    %105 = vmatpush1.msra.mxu0 %v78
    %106 = vmatprep.subr.mxu0 0.0
    %107 = vmatpush1.msra.mxu0 %v79
    %108 = vmatprep.subr.mxu0 0.0
    %109 = vmatpush1.msra.mxu0 0.0
    %110 = vmatprep.subr.mxu0 0.0
    %111 = vmatpush1.msra.mxu0 0.0
    %112 = vmatprep.subr.mxu0 0.0
    %113 = vmatpush1.msra.mxu0 0.0
    %114 = vmatprep.subr.mxu0 0.0
    %115 = vmatpush1.msra.mxu0 0.0
    %116 = vmatprep.subr.mxu0 0.0
    %117 = vmatpush1.msra.mxu0 0.0
    %118 = vmatprep.subr.mxu0 0.0
    %119 = vmatpush1.msra.mxu0 0.0
    %120 = vmatprep.subr.mxu0 0.0
    %121 = vmatpush1.msra.mxu0 0.0
    %122 = vmatprep.subr.mxu0 0.0
    %123 = vmatpush1.msra.mxu0 0.0
    %124 = vmatprep.subr.mxu0 0.0
    %125 = vmatpush1.msra.mxu0 0.0
    %126 = vmatprep.subr.mxu0 0.0
    %127 = vmatpush1.msra.mxu0 0.0
    %128 = vmatprep.subr.mxu0 0.0
    %129 = vmatpush1.msra.mxu0 0.0
    %130 = vmatprep.subr.mxu0 0.0
    %131 = vmatpush1.msra.mxu0 0.0
    %132 = vmatprep.subr.mxu0 0.0
    %133 = vmatpush1.msra.mxu0 0.0
    %134 = vmatprep.subr.mxu0 0.0
    %135 = vmatpush1.msra.mxu0 0.0
    %136 = vmatprep.subr.mxu0 0.0
    %137 = vmatpush1.msra.mxu0 0.0
    %138 = vmatprep.subr.mxu0 0.0
    %139 = vmatpush1.msra.mxu0 0.0
    %140 = vmatprep.subr.mxu0 0.0
    %141 = vmatpush1.msra.mxu0 0.0
    %142 = vmatprep.subr.mxu0 0.0
    %143 = vmatpush1.msra.mxu0 0.0
    %144 = vmatprep.subr.mxu0 0.0
    %145 = vmatpush1.msra.mxu0 0.0
    %146 = vmatprep.subr.mxu0 0.0
    %147 = vmatpush1.msra.mxu0 0.0
    %148 = vmatprep.subr.mxu0 0.0
    %149 = vmatpush1.msra.mxu0 0.0
    %150 = vmatprep.subr.mxu0 0.0
    %151 = vmatpush1.msra.mxu0 0.0
    %152 = vmatprep.subr.mxu0 0.0
    %153 = vmatpush1.msra.mxu0 0.0
    %154 = vmatprep.subr.mxu0 0.0
    %155 = vmatpush1.msra.mxu0 0.0
    %156 = vmatprep.subr.mxu0 0.0
    %157 = vmatpush1.msra.mxu0 0.0
    %158 = vmatprep.subr.mxu0 0.0
    %159 = vmatpush1.msra.mxu0 0.0
    %160 = vmatprep.subr.mxu0 0.0
    %161 = vmatpush1.msra.mxu0 0.0
    %162 = vmatprep.subr.mxu0 0.0
    %163 = vmatpush1.msra.mxu0 0.0
    %164 = vmatprep.mubr.f32.mxu0 0.0
    %165 = vmatmul.mubr.f32.gmra.mrb[0].mxu0 %v98
    %v166 = vpop.f32.mrb[0].mxu0
    %v167 = vadd.f32 %v94, %v166
    %v168 = vpop.f32.mrb[0].mxu0
    %169 = vdwg.mxu0
    %170 = vst [vmem:[#allocation10] sm:$0xff] %v167
    %v171 = vld [vmem:[%s5] sm:$0x1]
    %v173 = vlaneseq
    %v174 = vshrl.u32 %v173, 7
    %v175 = vsub.s32 0, %v174
    %v176 = vrot.slane %v171, %v175
    %vm178 = vcmask 523264
    %v180 = vsel %vm178, %v80, 0
    %182 = vmatprep.subr.mxu0 0.0
    %183 = vmatpush1.msra.mxu0 %v81
    %184 = vmatprep.subr.mxu0 0.0
    %185 = vmatpush1.msra.mxu0 %v82
    %186 = vmatprep.subr.mxu0 0.0
    %187 = vmatpush1.msra.mxu0 %v83
    %188 = vmatprep.subr.mxu0 0.0
    %189 = vmatpush1.msra.mxu0 %v84
    %190 = vmatprep.subr.mxu0 0.0
    %191 = vmatpush1.msra.mxu0 %v85
    %192 = vmatprep.subr.mxu0 0.0
    %193 = vmatpush1.msra.mxu0 %v86
    %194 = vmatprep.subr.mxu0 0.0
    %195 = vmatpush1.msra.mxu0 %v87
    %196 = vmatprep.subr.mxu0 0.0
    %197 = vmatpush1.msra.mxu0 %v88
    %198 = vmatprep.subr.mxu0 0.0
    %199 = vmatpush1.msra.mxu0 0.0
    %200 = vmatprep.subr.mxu0 0.0
    %201 = vmatpush1.msra.mxu0 0.0
    %202 = vmatprep.subr.mxu0 0.0
    %203 = vmatpush1.msra.mxu0 0.0
    %204 = vmatprep.subr.mxu0 0.0
    %205 = vmatpush1.msra.mxu0 0.0
    %206 = vmatprep.subr.mxu0 0.0
    %207 = vmatpush1.msra.mxu0 0.0
    %208 = vmatprep.subr.mxu0 0.0
    %209 = vmatpush1.msra.mxu0 0.0
    %210 = vmatprep.subr.mxu0 0.0
    %211 = vmatpush1.msra.mxu0 0.0
    %212 = vmatprep.subr.mxu0 0.0
    %213 = vmatpush1.msra.mxu0 0.0
    %214 = vmatprep.subr.mxu0 0.0
    %215 = vmatpush1.msra.mxu0 0.0
    %216 = vmatprep.subr.mxu0 0.0
    %217 = vmatpush1.msra.mxu0 0.0
    %218 = vmatprep.subr.mxu0 0.0
    %219 = vmatpush1.msra.mxu0 0.0
    %220 = vmatprep.subr.mxu0 0.0
    %221 = vmatpush1.msra.mxu0 0.0
    %222 = vmatprep.subr.mxu0 0.0
    %223 = vmatpush1.msra.mxu0 0.0
    %224 = vmatprep.subr.mxu0 0.0
    %225 = vmatpush1.msra.mxu0 0.0
    %226 = vmatprep.subr.mxu0 0.0
    %227 = vmatpush1.msra.mxu0 0.0
    %228 = vmatprep.subr.mxu0 0.0
    %229 = vmatpush1.msra.mxu0 0.0
    %230 = vmatprep.subr.mxu0 0.0
    %231 = vmatpush1.msra.mxu0 0.0
    %232 = vmatprep.subr.mxu0 0.0
    %233 = vmatpush1.msra.mxu0 0.0
    %234 = vmatprep.subr.mxu0 0.0
    %235 = vmatpush1.msra.mxu0 0.0
    %236 = vmatprep.subr.mxu0 0.0
    %237 = vmatpush1.msra.mxu0 0.0
    %238 = vmatprep.subr.mxu0 0.0
    %239 = vmatpush1.msra.mxu0 0.0
    %240 = vmatprep.subr.mxu0 0.0
    %241 = vmatpush1.msra.mxu0 0.0
    %242 = vmatprep.subr.mxu0 0.0
    %243 = vmatpush1.msra.mxu0 0.0
    %244 = vmatprep.subr.mxu0 0.0
    %245 = vmatpush1.msra.mxu0 0.0
    %246 = vmatprep.mubr.f32.mxu0 0.0
    %247 = vmatmul.mubr.f32.gmra.mrb[0].mxu0 %v180
    %v248 = vpop.f32.mrb[0].mxu0
    %v249 = vadd.f32 %v176, %v248
    %v250 = vpop.f32.mrb[0].mxu0
    %251 = vdwg.mxu0
    %252 = vst [vmem:[#allocation10 + $0x8] sm:$0xff] %v249
    // Predicated region
    $region42: #{tpu_custom_call.1} parent=1 // pred_check
      _
    $region43: #{tpu_custom_call.1} parent=1 // pred_check_branch
      %254 = sbr.rel (0) target = $region45
    $region44: #{tpu_custom_call.1} parent=1 // pred_region
      %s256 = ssub.s32 256, 256
      %257 = vsyncadd [#allocation4], %s256
      %s259 = sshll.u32 [#allocation10], 4
      %s260 = int_to_ptr.vmem [resolvable:$true] %s259
      %262 = dma.vmem_to_hbm [thread:$0]  %s260, 256, %s6, [#allocation4]
    $region45: #{tpu_custom_call.1} parent=1 // pred_fallthru
      _
    // Predicated region
    $region46: #{tpu_custom_call.1} parent=1 // pred_check
      _
    $region47: #{tpu_custom_call.1} parent=1 // pred_check_branch
      %264 = sbr.rel (0) target = $region49
    $region48: #{tpu_custom_call.1} parent=1 // pred_region
      %265 = dma.done [#allocation4], 256
    $region49: #{tpu_custom_call.1} parent=1 // pred_fallthru
      _
    %266 = vsyncpa [#allocation3], 1
    %267 = vsyncpa [#allocation6], 1
    %268 = vsyncpa [#allocation9], 1
    %269 = vsyncpa [#allocation4], 1

</llo_original>
